<compile_context>
chip_gen: v5e
topology: v5e:2x2
jax: 0.10.0
libtpu: 0.0.40
codegen_flags: <defaults>
</compile_context>

<pallas_src>
import jax
import jax.numpy as jnp
from jax.experimental import pallas as pl
from jax.experimental.pallas import tpu as pltpu


def _scale_kernel(ab_ref, x_ref, o_ref):
    # ab_ref: SMEM (2,) float32 -> [alpha, beta]
    # x_ref / o_ref: VMEM tile of the flattened depth slab.
    x = x_ref[...].astype(jnp.float32)          # compute in f32 regardless of input dtype
    o_ref[...] = (ab_ref[0] * x + ab_ref[1]).astype(o_ref.dtype)


def _pick_lane_width(n, max_width=4096):
    """Largest multiple of 128 (<= max_width) that divides n, or None."""
    for w in range(max_width, 127, -128):
        if n % w == 0:
            return w
    return None


def scale_forward(depth, scales, *, target_tile_bytes=4 << 20, max_lane_width=4096):
    """out = scales[..., 0] * depth + scales[..., 1]  (length == 1 case).

    depth:  arbitrary-shaped float tensor (e.g. NCHW depth map)
    scales: (1, 1, 2) float32 -> [alpha, beta]

    For the in-place alias (input_output_aliases) to actually avoid a copy, call this
    inside a jit where `depth` is an intermediate or a donated argument.
    """
    # TODO(synk): length > 1 per-row affine (scales shape (L,1,2)) is unimplemented.
    assert scales.shape == (1, 1, 2), "kernel implements the length=1 case"

    orig_shape = depth.shape
    n = depth.size
    ab = scales.reshape(2).astype(jnp.float32)  # [alpha, beta] -> SMEM

    w = _pick_lane_width(n, max_lane_width)
    if w is None:
        # Ragged element count (n % 128 != 0): one fused XLA pass is strictly cheaper
        # than pad + kernel + slice (which re-reads/re-writes the whole tensor).
        return (ab[0] * depth.astype(jnp.float32) + ab[1]).astype(depth.dtype)

    rows = n // w
    x2d = depth.reshape(rows, w)                # pure bitcast: n % w == 0, contiguous

    itemsize = jnp.dtype(depth.dtype).itemsize
    sublane = 8 * max(1, 4 // itemsize)         # 8 (f32) / 16 (bf16) / 32 (8-bit) packing

    # Size tile by bytes so per-step HBM traffic is dtype-independent.
    block_rows = max(sublane, (target_tile_bytes // (w * itemsize)) // sublane * sublane)
    block_rows = min(block_rows, rows)

    # v7x megacore: avoid a 1-step grid when the tensor is big enough to split in two.
    num_steps = -(-rows // block_rows)
    if num_steps == 1 and rows >= 2 * sublane:
        block_rows = -(-((rows + 1) // 2) // sublane) * sublane

    grid = (pl.cdiv(rows, block_rows),)         # ragged last block masked by Pallas

    # Double-buffered input + output = 4 * tile_bytes; raise the scoped-VMEM limit so the
    # 4 MiB tile also works on v5e (16 MiB default), staying under v7x's 64 MiB physical.
    tile_bytes = block_rows * w * itemsize
    vmem_limit = int(min(max(4 * tile_bytes + (4 << 20), 32 << 20), 48 << 20))

    out2d = pl.pallas_call(
        _scale_kernel,
        out_shape=jax.ShapeDtypeStruct((rows, w), depth.dtype),
        grid=grid,
        in_specs=[
            pl.BlockSpec(memory_space=pltpu.SMEM),               # scales (2,) in SMEM
            pl.BlockSpec((block_rows, w), lambda i: (i, 0)),     # depth tile
        ],
        out_specs=pl.BlockSpec((block_rows, w), lambda i: (i, 0)),
        input_output_aliases={1: 0},  # elementwise, in-place safe (effective if donated)
        compiler_params=pltpu.CompilerParams(
            dimension_semantics=("parallel",),                   # megacore split on v7x
            vmem_limit_bytes=vmem_limit,
        ),
    )(ab, x2d)

    return out2d.reshape(orig_shape)


if __name__ == "__main__":
    key = jax.random.PRNGKey(0)

    # Small example input consistent with a depth-map batch: NCHW = (2, 4, 16, 16)
    depth = jax.random.normal(key, (2, 4, 16, 16), dtype=jnp.float32)

    # Module __init__: alpha = 1.0, beta = 0.0, repeated to shape (length=1, 1, 2)
    scales_init = jnp.tile(jnp.array([1.0, 0.0], dtype=jnp.float32), (1, 1, 1))
    out = jax.block_until_ready(scale_forward(depth, scales_init))
    ref = scales_init[..., 0] * depth + scales_init[..., 1]
    assert out.shape == depth.shape
    assert jnp.allclose(out, ref, atol=1e-6), "mismatch vs reference (init params)"

    # "Trained" parameter values to exercise the affine math (same forward semantics).
    scales_t = jnp.array([1.5, -0.25], dtype=jnp.float32).reshape(1, 1, 2)
    out_t = jax.block_until_ready(scale_forward(depth, scales_t))
    ref_t = scales_t[..., 0] * depth + scales_t[..., 1]
    assert jnp.allclose(out_t, ref_t, atol=1e-6), "mismatch vs reference (trained params)"

    # bf16 input: f32 compute inside the kernel, cast only on the final store.
    depth_bf16 = depth.astype(jnp.bfloat16)
    out_bf = jax.block_until_ready(scale_forward(depth_bf16, scales_t))
    ref_bf = (1.5 * depth_bf16.astype(jnp.float32) - 0.25).astype(jnp.bfloat16)
    assert out_bf.dtype == jnp.bfloat16
    assert jnp.allclose(out_bf.astype(jnp.float32), ref_bf.astype(jnp.float32),
                        atol=1e-2), "mismatch vs reference (bf16)"

    print("KERNEL_OK")
</pallas_src>

<mosaic_0001>
module attributes {stable_mosaic.version = 11 : i64} {
  func.func @_scale_kernel(%arg0: i32, %arg1: memref<2xf32, #tpu.memory_space<smem>>, %arg2: memref<1x2048xf32, #tpu.memory_space<vmem>>, %arg3: memref<1x2048xf32, #tpu.memory_space<vmem>>) attributes {dimension_semantics = [#tpu.dimension_semantics<parallel>], iteration_bounds = array<i64: 1>, scalar_prefetch = 0 : i64, scratch_operands = 0 : i64, tpu.core_type = #tpu.core_type<tc>, window_params = [{transform_indices = @transform_0, window_bounds = array<i64: 2>}, {transform_indices = @transform_1, window_bounds = array<i64: 1, 2048>}, {transform_indices = @transform_2, window_bounds = array<i64: 1, 2048>}]} {
    %c0 = arith.constant 0 : index
    %c0_0 = arith.constant 0 : index
    %0 = vector.load %arg2[%c0, %c0_0] : memref<1x2048xf32, #tpu.memory_space<vmem>>, vector<1x2048xf32>
    %c0_1 = arith.constant 0 : index
    %1 = memref.load %arg1[%c0_1] : memref<2xf32, #tpu.memory_space<smem>>
    %2 = vector.broadcast %1 : f32 to vector<1x2048xf32>
    %3 = arith.mulf %2, %0 : vector<1x2048xf32>
    %c1 = arith.constant 1 : index
    %4 = memref.load %arg1[%c1] : memref<2xf32, #tpu.memory_space<smem>>
    %5 = vector.broadcast %4 : f32 to vector<1x2048xf32>
    %6 = arith.addf %3, %5 : vector<1x2048xf32>
    %c0_2 = arith.constant 0 : index
    %c0_3 = arith.constant 0 : index
    %7 = vector.load %arg3[%c0_2, %c0_3] : memref<1x2048xf32, #tpu.memory_space<vmem>>, vector<1x2048xf32>
    tpu.vector_store %arg3[%c0_2, %c0_3], %6 {strides = array<i32>} : memref<1x2048xf32, #tpu.memory_space<vmem>>, vector<1x2048xf32>,
    return
  }
  func.func @transform_0(%arg0: i32) -> i32 {
    %c0_i32 = arith.constant 0 : i32
    %c0_i32_0 = arith.constant 0 : i32
    return %c0_i32 : i32
  }
  func.func @transform_1(%arg0: i32) -> (i32, i32) {
    %c0_i32 = arith.constant 0 : i32
    %c0_i32_0 = arith.constant 0 : i32
    return %arg0, %c0_i32 : i32, i32
  }
  func.func @transform_2(%arg0: i32) -> (i32, i32) {
    %c0_i32 = arith.constant 0 : i32
    %c0_i32_0 = arith.constant 0 : i32
    return %arg0, %c0_i32 : i32, i32
  }
}

</mosaic_0001>

<llo_original>
// kernel: tpu_custom_call.1
$region0: #{tpu_custom_call.1}
  #allocation0 [shape = 'u32[]', space=smem, size = 0x4, offset = 0x4, fixed_abs, tag = 'smem constant byte address 0x4 - core index']
  #allocation1 [shape = 'u32[72,128]{1,0:T(1,128)}', space=vmem, size = 0x9000, scoped, tag = 'internal scratch']
  %s0 = inlined_call_operand.vmem [shape: f32[2], index: 0, kind: input, shape index: {}]
  %s1 = inlined_call_operand.hbm [shape: f32[1,2048], index: 1, kind: input, shape index: {}, may-alias: {1,2}]
  %s2 = inlined_call_operand.hbm [shape: f32[1,2048], index: 2, kind: output, shape index: {}, may-alias: {1,2}]
  %s3 = sld [smem:[#allocation0]]
  $region26: #{tpu_custom_call.1} parent=0
    _
  %s5 = ssub.s32 1, %s3
  %s6 = scalar_select 0, %s5, %s3
  $region1: #{tpu_custom_call.1} parent=0
    #allocation2 [shape = 'u8[512]{0}', space=smem, size = 0x200, scoped, tag = 'input window, operand 0, single buffered']
    #allocation3 [shape = 's32[1]{0}', space=sflag, size = 0x4, scoped, tag = 'scoped memory for tpu_custom_call.1']
    #allocation4 [shape = 's32[1]{0}', space=sflag, size = 0x4, scoped, tag = 'scoped memory for tpu_custom_call.1']
    #allocation5 [shape = 's32[1]{0}', space=sflag, size = 0x4, scoped, tag = 'scoped memory for tpu_custom_call.1']
    #allocation6 [shape = 'u8[8192]{0}', space=vmem, size = 0x2000, scoped, tag = 'input window, operand 1, single buffered']
    #allocation7 [shape = 'u8[8192]{0}', space=vmem, size = 0x2000, scoped, tag = 'output window, operand 0, single buffered']
    %7 = vsyncpa [#allocation5], 0
    %8 = vsyncpa [#allocation3], 0
    %9 = vsyncpa [#allocation4], 0
    // Predicated region
    $region2: #{tpu_custom_call.1} parent=1 // pred_check
      _
    $region3: #{tpu_custom_call.1} parent=1 // pred_check_branch
      %11 = sbr.rel (0) target = $region5
    $region4: #{tpu_custom_call.1} parent=1 // pred_region
      %13 = vsyncadd [#allocation5], 0
      %s15 = sshll.u32 %s0, 4
      %s16 = int_to_ptr.vmem [resolvable:$true] %s15
      %18 = dma.vmem_to_smem %s16, 16, [#allocation2], [#allocation5]
    $region5: #{tpu_custom_call.1} parent=1 // pred_fallthru
      _
    // Predicated region
    $region6: #{tpu_custom_call.1} parent=1 // pred_check
      _
    $region7: #{tpu_custom_call.1} parent=1 // pred_check_branch
      %20 = sbr.rel (0) target = $region9
    $region8: #{tpu_custom_call.1} parent=1 // pred_region
      %22 = vsyncadd [#allocation3], 0
      %s24 = sshll.u32 %s1, 4
      %s25 = int_to_ptr.hbm [resolvable:$true] %s24
      %s26 = sshll.u32 [#allocation6], 4
      %s27 = int_to_ptr.vmem [resolvable:$true] %s26
      %29 = dma.hbm_to_vmem [thread:$0]  %s25, 256, %s27, [#allocation3]
    $region9: #{tpu_custom_call.1} parent=1 // pred_fallthru
      _
    // Predicated region
    $region10: #{tpu_custom_call.1} parent=1 // pred_check
      _
    $region11: #{tpu_custom_call.1} parent=1 // pred_check_branch
      %31 = sbr.rel (0) target = $region13
    $region12: #{tpu_custom_call.1} parent=1 // pred_region
      %33 = dma.done [#allocation5], 16
    $region13: #{tpu_custom_call.1} parent=1 // pred_fallthru
      _
    // Predicated region
    $region14: #{tpu_custom_call.1} parent=1 // pred_check
      _
    $region15: #{tpu_custom_call.1} parent=1 // pred_check_branch
      %35 = sbr.rel (0) target = $region17
    $region16: #{tpu_custom_call.1} parent=1 // pred_region
      %37 = dma.done [#allocation3], 256
    $region17: #{tpu_custom_call.1} parent=1 // pred_fallthru
      _
    %38 = sfence
    %v39 = vld [vmem:[#allocation6] sm:$0xff]
    %v40 = vld [vmem:[#allocation6 + $0x8] sm:$0xff]
    %s41 = sld [smem:[#allocation2]]
    %v42 = vstv %s41
    %v43 = vmul.f32 %v42, %v39
    %v44 = vmul.f32 %v42, %v40
    %s45 = sld [smem:[#allocation2 + $0x1]]
    %v46 = vstv %s45
    %v47 = vadd.f32 %v43, %v46
    %v48 = vadd.f32 %v44, %v46
    %49 = vst [vmem:[#allocation7] sm:$0xff] %v47
    %50 = vst [vmem:[#allocation7 + $0x8] sm:$0xff] %v48
    // Predicated region
    $region18: #{tpu_custom_call.1} parent=1 // pred_check
      _
    $region19: #{tpu_custom_call.1} parent=1 // pred_check_branch
      %52 = sbr.rel (0) target = $region21
    $region20: #{tpu_custom_call.1} parent=1 // pred_region
      %54 = vsyncadd [#allocation4], 0
      %s56 = sshll.u32 [#allocation7], 4
      %s57 = int_to_ptr.vmem [resolvable:$true] %s56
      %s58 = sshll.u32 %s2, 4
      %s59 = int_to_ptr.hbm [resolvable:$true] %s58
      %61 = dma.vmem_to_hbm [thread:$0]  %s57, 256, %s59, [#allocation4]
    $region21: #{tpu_custom_call.1} parent=1 // pred_fallthru
      _
    // Predicated region
    $region22: #{tpu_custom_call.1} parent=1 // pred_check
      _
    $region23: #{tpu_custom_call.1} parent=1 // pred_check_branch
      %63 = sbr.rel (0) target = $region25
    $region24: #{tpu_custom_call.1} parent=1 // pred_region
      %65 = dma.done [#allocation4], 256
    $region25: #{tpu_custom_call.1} parent=1 // pred_fallthru
      _
    %66 = vsyncpa [#allocation3], 1
    %67 = vsyncpa [#allocation4], 1
    %68 = vsyncpa [#allocation5], 1

</llo_original>
